<compile_context>
chip_gen: v5e
topology: v5e:2x2
jax: 0.10.0
libtpu: 0.0.40
codegen_flags: <defaults>
</compile_context>

<pallas_src>
import functools

import jax
import jax.numpy as jnp
from jax.experimental import pallas as pl
from jax.experimental.pallas import tpu as pltpu

EPS = 1e-5
NBLOCKS = 2
LANES = 128
SUBLANES = 8


def _round_up(n, m):
    return ((n + m - 1) // m) * m


def _pad2(a, rows, cols):
    out = jnp.zeros((rows, cols), a.dtype)
    return out.at[: a.shape[0], : a.shape[1]].set(a)


def _vmem_limit_bytes():
    # Raise the scoped VMEM limit toward physical capacity (128 MiB on
    # v5e/v6e, 64 MiB on v7x), leaving headroom for compiler scratch.
    try:
        phys = pltpu.get_tpu_info().vmem_capacity_bytes
    except Exception:
        phys = 128 * 1024 * 1024
    return int(max(32 * 1024 * 1024, phys - 16 * 1024 * 1024))


# ----------------------------------------------------------------------------
# Kernel
# ----------------------------------------------------------------------------
def resmlp_kernel(scal_ref, x_ref, w_ref, vec_ref, out_ref, *,
                  nblocks, input_size, output_size):
    """Whole forward pass; all operands resident in VMEM.

    scal_ref : (1,)                      f32 SMEM  -> inv_n (1 / batch)
    x_ref    : (N, input_size)           f32       unpadded input
    w_ref    : (2*nblocks+2, FP, FP)     f32/bf16  stacked weights
                 [0] = w_in (rows 0:input_size live)
                 [1 + 2k], [2 + 2k] = block-k weights
                 [2*nblocks+1] = w_out (cols 0:output_size live)
    vec_ref  : (NV, FP)                  f32       packed small params
    out_ref  : (N, output_size)          f32
    """
    inv_n = scal_ref[0]
    vecs = vec_ref[...]  # one load for all small params

    def vrow(i):  # static row slice -> (1, FP)
        return vecs[i:i + 1, :]

    def linear(h, w, b):
        # Narrow (bf16) MXU operands, f32 accumulation.
        return jnp.dot(h.astype(w.dtype), w,
                       preferred_element_type=jnp.float32) + b

    def bn_relu(h, g, b):
        # Training-mode BatchNorm1d: batch stats, biased variance, eps=1e-5.
        # Two-pass (mean, then centered sum-of-squares) for numerical safety;
        # the normalization is folded into a per-column scale + shift.
        mean = jnp.sum(h, axis=0, keepdims=True) * inv_n
        c = h - mean
        var = jnp.sum(c * c, axis=0, keepdims=True) * inv_n
        scale = g * jax.lax.rsqrt(var + EPS)
        return jnp.maximum(c * scale + b, 0.0)

    # In_layer + relu_1: unpadded K=input_size matmul against an aligned
    # static row-slice of the padded input weight.
    w_in = w_ref[0]
    h = jnp.maximum(linear(x_ref[...], w_in[:input_size, :], vrow(0)), 0.0)

    # Residual blocks: BN -> ReLU -> Linear -> BN -> ReLU -> Linear, + skip
    row = 1
    for k in range(nblocks):
        g1, bt1, b1 = vrow(row), vrow(row + 1), vrow(row + 2)
        g2, bt2, b2 = vrow(row + 3), vrow(row + 4), vrow(row + 5)
        row += 6
        r = linear(bn_relu(h, g1, bt1), w_ref[1 + 2 * k], b1)
        r = linear(bn_relu(r, g2, bt2), w_ref[2 + 2 * k], b2)
        h = h + r

    # Final_BN + relu_n + Out_layer; store only the live output lanes.
    gf, btf, b_out = vrow(row), vrow(row + 1), vrow(row + 2)
    y = linear(bn_relu(h, gf, btf), w_ref[2 * nblocks + 1], b_out)
    out_ref[...] = y[:, :output_size]


# ----------------------------------------------------------------------------
# Host-side packing (call ONCE per parameter set) + jitted forward
# ----------------------------------------------------------------------------
def pack_params(params, *, input_size, hidden_size, output_size,
                nblocks=NBLOCKS, weight_dtype=jnp.bfloat16):
    """Pack unpadded PyTorch-shaped params into two stacked, lane-padded slabs.

    Returns (w_all, vecs):
      w_all : (2*nblocks+2, FP, FP)  weight_dtype
      vecs  : (NV, FP)               f32   rows = [b_in,
                                            per block: g1, bt1, b1, g2, bt2, b2,
                                            gf, btf, b_out]
    Padded lanes carry gamma=0 / beta=0 / bias=0 and zero weight rows/cols, so
    they stay exactly zero through every BN/ReLU/Linear.
    """
    FP = _round_up(max(hidden_size, output_size, input_size), LANES)

    w_in, b_in = params[0], params[1]
    idx = 2
    weights, vec_rows = [w_in], [b_in]
    for _ in range(nblocks):
        g1, bt1, w1, b1, g2, bt2, w2, b2 = params[idx:idx + 8]
        idx += 8
        weights += [w1, w2]
        vec_rows += [g1, bt1, b1, g2, bt2, b2]
    gf, btf, w_out, b_out = params[idx:idx + 4]
    weights += [w_out]
    vec_rows += [gf, btf, b_out]

    w_all = jnp.stack([_pad2(w, FP, FP) for w in weights]).astype(weight_dtype)

    nvec = _round_up(len(vec_rows), SUBLANES)
    vecs = jnp.zeros((nvec, FP), jnp.float32)
    for i, v in enumerate(vec_rows):
        vecs = vecs.at[i:i + 1, : v.shape[1]].set(v.astype(jnp.float32))
    return w_all, vecs


def _resmlp_forward_packed(x, w_all, vecs, input_size, output_size, nblocks):
    n = x.shape[0]
    inv_n = jnp.full((1,), 1.0 / n, jnp.float32)

    vmem = pl.BlockSpec(memory_space=pltpu.MemorySpace.VMEM)
    smem = pl.BlockSpec(memory_space=pltpu.MemorySpace.SMEM)

    kernel = functools.partial(resmlp_kernel, nblocks=nblocks,
                               input_size=input_size, output_size=output_size)
    return pl.pallas_call(
        kernel,
        out_shape=jax.ShapeDtypeStruct((n, output_size), jnp.float32),
        in_specs=[smem, vmem, vmem, vmem],
        out_specs=vmem,
        compiler_params=pltpu.CompilerParams(
            vmem_limit_bytes=_vmem_limit_bytes()),
    )(inv_n, x.astype(jnp.float32), w_all, vecs)


# Static arg positions: input_size, output_size, nblocks.
resmlp_forward_packed = jax.jit(_resmlp_forward_packed,
                                static_argnums=(3, 4, 5))


# ----------------------------------------------------------------------------
# Synthetic init + pure-JAX reference (PyTorch training-mode semantics)
# ----------------------------------------------------------------------------
def init_params(key, input_size, hidden_size, output_size, nblocks=NBLOCKS):
    keys = jax.random.split(key, 2 + nblocks)

    def lin(k, fan_in, fan_out):
        bound = 1.0 / jnp.sqrt(fan_in)
        kw, kb = jax.random.split(k)
        w = jax.random.uniform(kw, (fan_in, fan_out), jnp.float32, -bound, bound)
        b = jax.random.uniform(kb, (1, fan_out), jnp.float32, -bound, bound)
        return w, b

    def bn(features):
        return (jnp.ones((1, features), jnp.float32),
                jnp.zeros((1, features), jnp.float32))

    params = []
    w_in, b_in = lin(keys[0], input_size, hidden_size)
    params += [w_in, b_in]
    for k in range(nblocks):
        k1, k2 = jax.random.split(keys[1 + k])
        g1, bt1 = bn(hidden_size)
        w1, b1 = lin(k1, hidden_size, hidden_size)
        g2, bt2 = bn(hidden_size)
        w2, b2 = lin(k2, hidden_size, hidden_size)
        params += [g1, bt1, w1, b1, g2, bt2, w2, b2]
    gf, btf = bn(hidden_size)
    w_out, b_out = lin(keys[1 + nblocks], hidden_size, output_size)
    params += [gf, btf, w_out, b_out]
    return params


def resmlp_reference(x, params, nblocks=NBLOCKS):
    def bn_relu(h, g, b):
        m = jnp.mean(h, axis=0, keepdims=True)
        v = jnp.mean((h - m) ** 2, axis=0, keepdims=True)
        return jnp.maximum((h - m) / jnp.sqrt(v + EPS) * g + b, 0.0)

    w_in, b_in = params[0], params[1]
    h = jnp.maximum(x @ w_in + b_in, 0.0)
    idx = 2
    for _ in range(nblocks):
        g1, bt1, w1, b1, g2, bt2, w2, b2 = params[idx:idx + 8]
        idx += 8
        r = bn_relu(h, g1, bt1) @ w1 + b1
        r = bn_relu(r, g2, bt2) @ w2 + b2
        h = h + r
    gf, btf, w_out, b_out = params[idx:idx + 4]
    return bn_relu(h, gf, btf) @ w_out + b_out


if __name__ == "__main__":
    batch = 8
    input_size = 16
    hidden_size = 32
    output_size = 8

    key = jax.random.PRNGKey(0)
    kx, kp = jax.random.split(key)
    x = jax.random.normal(kx, (batch, input_size), jnp.float32)
    params = init_params(kp, input_size, hidden_size, output_size)

    ref = resmlp_reference(x, params)

    # Packing happens ONCE, outside the per-call path.
    w_f32, vecs = pack_params(params, input_size=input_size,
                              hidden_size=hidden_size, output_size=output_size,
                              weight_dtype=jnp.float32)
    w_bf16, _ = pack_params(params, input_size=input_size,
                            hidden_size=hidden_size, output_size=output_size,
                            weight_dtype=jnp.bfloat16)

    # f32 MXU operands: validation path, tight tolerance vs reference.
    out_f32 = jax.block_until_ready(
        resmlp_forward_packed(x, w_f32, vecs, input_size, output_size, NBLOCKS))
    assert out_f32.shape == (batch, output_size)
    assert jnp.allclose(out_f32, ref, atol=1e-3, rtol=1e-3)

    # bf16 MXU operands (default, all generations), f32 accumulation:
    # precision traded for MXU throughput / halved weight DMA.
    out_bf16 = jax.block_until_ready(
        resmlp_forward_packed(x, w_bf16, vecs, input_size, output_size, NBLOCKS))
    assert out_bf16.shape == (batch, output_size)
    assert jnp.allclose(out_bf16, ref, atol=1e-1, rtol=1e-1)

    print("KERNEL_OK")
</pallas_src>

<mosaic_0001>
module attributes {stable_mosaic.version = 11 : i64} {
  func.func @resmlp_kernel(%arg0: memref<1xf32, #tpu.memory_space<smem>>, %arg1: memref<8x16xf32, #tpu.memory_space<vmem>>, %arg2: memref<6x128x128xf32, #tpu.memory_space<vmem>>, %arg3: memref<16x128xf32, #tpu.memory_space<vmem>>, %arg4: memref<8x8xf32, #tpu.memory_space<vmem>>) attributes {dimension_semantics = [], scalar_prefetch = 0 : i64, scratch_operands = 0 : i64, tpu.core_type = #tpu.core_type<tc>} {
    %c0 = arith.constant 0 : index
    %0 = memref.load %arg0[%c0] : memref<1xf32, #tpu.memory_space<smem>>
    %c0_0 = arith.constant 0 : index
    %c0_1 = arith.constant 0 : index
    %1 = vector.load %arg3[%c0_0, %c0_1] : memref<16x128xf32, #tpu.memory_space<vmem>>, vector<16x128xf32>
    %c0_2 = arith.constant 0 : index
    %c0_3 = arith.constant 0 : index
    %c0_4 = arith.constant 0 : index
    %2 = vector.load %arg2[%c0_2, %c0_3, %c0_4] : memref<6x128x128xf32, #tpu.memory_space<vmem>>, vector<1x128x128xf32>
    %3 = vector.shape_cast %2 : vector<1x128x128xf32> to vector<128x128xf32>
    %c0_5 = arith.constant 0 : index
    %c0_6 = arith.constant 0 : index
    %4 = vector.load %arg1[%c0_5, %c0_6] : memref<8x16xf32, #tpu.memory_space<vmem>>, vector<8x16xf32>
    %5 = vector.extract_strided_slice %3 {offsets = [0, 0], sizes = [16, 128], strides = [1, 1]} : vector<128x128xf32> to vector<16x128xf32>
    %6 = vector.extract_strided_slice %1 {offsets = [0, 0], sizes = [1, 128], strides = [1, 1]} : vector<16x128xf32> to vector<1x128xf32>
    %cst = arith.constant dense<0.000000e+00> : vector<8x128xf32>
    %7 = tpu.matmul %4, %5, %cst {dimension_numbers = #tpu.dot_dimension_numbers<[1], [0], [0], [1], [0, 0, 1, 1], [], []>} : vector<8x16xf32>, vector<16x128xf32>, vector<8x128xf32> -> vector<8x128xf32>
    %8 = vector.broadcast %6 : vector<1x128xf32> to vector<8x128xf32>
    %9 = arith.addf %7, %8 : vector<8x128xf32>
    %cst_7 = arith.constant 0.000000e+00 : f32
    %10 = vector.broadcast %cst_7 : f32 to vector<8x128xf32>
    %11 = arith.maximumf %9, %10 : vector<8x128xf32>
    %12 = vector.extract_strided_slice %1 {offsets = [1, 0], sizes = [1, 128], strides = [1, 1]} : vector<16x128xf32> to vector<1x128xf32>
    %13 = vector.extract_strided_slice %1 {offsets = [2, 0], sizes = [1, 128], strides = [1, 1]} : vector<16x128xf32> to vector<1x128xf32>
    %14 = vector.extract_strided_slice %1 {offsets = [3, 0], sizes = [1, 128], strides = [1, 1]} : vector<16x128xf32> to vector<1x128xf32>
    %15 = vector.extract_strided_slice %1 {offsets = [4, 0], sizes = [1, 128], strides = [1, 1]} : vector<16x128xf32> to vector<1x128xf32>
    %16 = vector.extract_strided_slice %1 {offsets = [5, 0], sizes = [1, 128], strides = [1, 1]} : vector<16x128xf32> to vector<1x128xf32>
    %17 = vector.extract_strided_slice %1 {offsets = [6, 0], sizes = [1, 128], strides = [1, 1]} : vector<16x128xf32> to vector<1x128xf32>
    %cst_8 = arith.constant dense<0.000000e+00> : vector<128xf32>
    %18 = vector.multi_reduction <add>, %11, %cst_8 [0] : vector<8x128xf32> to vector<128xf32>
    %19 = vector.shape_cast %18 : vector<128xf32> to vector<1x128xf32>
    %20 = vector.broadcast %0 : f32 to vector<1x128xf32>
    %21 = arith.mulf %19, %20 : vector<1x128xf32>
    %22 = vector.broadcast %21 : vector<1x128xf32> to vector<8x128xf32>
    %23 = arith.subf %11, %22 : vector<8x128xf32>
    %24 = arith.mulf %23, %23 : vector<8x128xf32>
    %cst_9 = arith.constant dense<0.000000e+00> : vector<128xf32>
    %25 = vector.multi_reduction <add>, %24, %cst_9 [0] : vector<8x128xf32> to vector<128xf32>
    %26 = vector.shape_cast %25 : vector<128xf32> to vector<1x128xf32>
    %27 = vector.broadcast %0 : f32 to vector<1x128xf32>
    %28 = arith.mulf %26, %27 : vector<1x128xf32>
    %cst_10 = arith.constant 9.99999974E-6 : f32
    %29 = vector.broadcast %cst_10 : f32 to vector<1x128xf32>
    %30 = arith.addf %28, %29 : vector<1x128xf32>
    %31 = math.rsqrt %30 : vector<1x128xf32>
    %32 = arith.mulf %12, %31 : vector<1x128xf32>
    %33 = vector.broadcast %32 : vector<1x128xf32> to vector<8x128xf32>
    %34 = arith.mulf %23, %33 : vector<8x128xf32>
    %35 = vector.broadcast %13 : vector<1x128xf32> to vector<8x128xf32>
    %36 = arith.addf %34, %35 : vector<8x128xf32>
    %cst_11 = arith.constant 0.000000e+00 : f32
    %37 = vector.broadcast %cst_11 : f32 to vector<8x128xf32>
    %38 = arith.maximumf %36, %37 : vector<8x128xf32>
    %c1 = arith.constant 1 : index
    %c0_12 = arith.constant 0 : index
    %c0_13 = arith.constant 0 : index
    %39 = vector.load %arg2[%c1, %c0_12, %c0_13] : memref<6x128x128xf32, #tpu.memory_space<vmem>>, vector<1x128x128xf32>
    %40 = vector.shape_cast %39 : vector<1x128x128xf32> to vector<128x128xf32>
    %cst_14 = arith.constant dense<0.000000e+00> : vector<8x128xf32>
    %41 = tpu.matmul %38, %40, %cst_14 {dimension_numbers = #tpu.dot_dimension_numbers<[1], [0], [0], [1], [0, 0, 1, 1], [], []>} : vector<8x128xf32>, vector<128x128xf32>, vector<8x128xf32> -> vector<8x128xf32>
    %42 = vector.broadcast %14 : vector<1x128xf32> to vector<8x128xf32>
    %43 = arith.addf %41, %42 : vector<8x128xf32>
    %cst_15 = arith.constant dense<0.000000e+00> : vector<128xf32>
    %44 = vector.multi_reduction <add>, %43, %cst_15 [0] : vector<8x128xf32> to vector<128xf32>
    %45 = vector.shape_cast %44 : vector<128xf32> to vector<1x128xf32>
    %46 = vector.broadcast %0 : f32 to vector<1x128xf32>
    %47 = arith.mulf %45, %46 : vector<1x128xf32>
    %48 = vector.broadcast %47 : vector<1x128xf32> to vector<8x128xf32>
    %49 = arith.subf %43, %48 : vector<8x128xf32>
    %50 = arith.mulf %49, %49 : vector<8x128xf32>
    %cst_16 = arith.constant dense<0.000000e+00> : vector<128xf32>
    %51 = vector.multi_reduction <add>, %50, %cst_16 [0] : vector<8x128xf32> to vector<128xf32>
    %52 = vector.shape_cast %51 : vector<128xf32> to vector<1x128xf32>
    %53 = vector.broadcast %0 : f32 to vector<1x128xf32>
    %54 = arith.mulf %52, %53 : vector<1x128xf32>
    %cst_17 = arith.constant 9.99999974E-6 : f32
    %55 = vector.broadcast %cst_17 : f32 to vector<1x128xf32>
    %56 = arith.addf %54, %55 : vector<1x128xf32>
    %57 = math.rsqrt %56 : vector<1x128xf32>
    %58 = arith.mulf %15, %57 : vector<1x128xf32>
    %59 = vector.broadcast %58 : vector<1x128xf32> to vector<8x128xf32>
    %60 = arith.mulf %49, %59 : vector<8x128xf32>
    %61 = vector.broadcast %16 : vector<1x128xf32> to vector<8x128xf32>
    %62 = arith.addf %60, %61 : vector<8x128xf32>
    %cst_18 = arith.constant 0.000000e+00 : f32
    %63 = vector.broadcast %cst_18 : f32 to vector<8x128xf32>
    %64 = arith.maximumf %62, %63 : vector<8x128xf32>
    %c2 = arith.constant 2 : index
    %c0_19 = arith.constant 0 : index
    %c0_20 = arith.constant 0 : index
    %65 = vector.load %arg2[%c2, %c0_19, %c0_20] : memref<6x128x128xf32, #tpu.memory_space<vmem>>, vector<1x128x128xf32>
    %66 = vector.shape_cast %65 : vector<1x128x128xf32> to vector<128x128xf32>
    %cst_21 = arith.constant dense<0.000000e+00> : vector<8x128xf32>
    %67 = tpu.matmul %64, %66, %cst_21 {dimension_numbers = #tpu.dot_dimension_numbers<[1], [0], [0], [1], [0, 0, 1, 1], [], []>} : vector<8x128xf32>, vector<128x128xf32>, vector<8x128xf32> -> vector<8x128xf32>
    %68 = vector.broadcast %17 : vector<1x128xf32> to vector<8x128xf32>
    %69 = arith.addf %67, %68 : vector<8x128xf32>
    %70 = arith.addf %11, %69 : vector<8x128xf32>
    %71 = vector.extract_strided_slice %1 {offsets = [7, 0], sizes = [1, 128], strides = [1, 1]} : vector<16x128xf32> to vector<1x128xf32>
    %72 = vector.extract_strided_slice %1 {offsets = [8, 0], sizes = [1, 128], strides = [1, 1]} : vector<16x128xf32> to vector<1x128xf32>
    %73 = vector.extract_strided_slice %1 {offsets = [9, 0], sizes = [1, 128], strides = [1, 1]} : vector<16x128xf32> to vector<1x128xf32>
    %74 = vector.extract_strided_slice %1 {offsets = [10, 0], sizes = [1, 128], strides = [1, 1]} : vector<16x128xf32> to vector<1x128xf32>
    %75 = vector.extract_strided_slice %1 {offsets = [11, 0], sizes = [1, 128], strides = [1, 1]} : vector<16x128xf32> to vector<1x128xf32>
    %76 = vector.extract_strided_slice %1 {offsets = [12, 0], sizes = [1, 128], strides = [1, 1]} : vector<16x128xf32> to vector<1x128xf32>
    %cst_22 = arith.constant dense<0.000000e+00> : vector<128xf32>
    %77 = vector.multi_reduction <add>, %70, %cst_22 [0] : vector<8x128xf32> to vector<128xf32>
    %78 = vector.shape_cast %77 : vector<128xf32> to vector<1x128xf32>
    %79 = vector.broadcast %0 : f32 to vector<1x128xf32>
    %80 = arith.mulf %78, %79 : vector<1x128xf32>
    %81 = vector.broadcast %80 : vector<1x128xf32> to vector<8x128xf32>
    %82 = arith.subf %70, %81 : vector<8x128xf32>
    %83 = arith.mulf %82, %82 : vector<8x128xf32>
    %cst_23 = arith.constant dense<0.000000e+00> : vector<128xf32>
    %84 = vector.multi_reduction <add>, %83, %cst_23 [0] : vector<8x128xf32> to vector<128xf32>
    %85 = vector.shape_cast %84 : vector<128xf32> to vector<1x128xf32>
    %86 = vector.broadcast %0 : f32 to vector<1x128xf32>
    %87 = arith.mulf %85, %86 : vector<1x128xf32>
    %cst_24 = arith.constant 9.99999974E-6 : f32
    %88 = vector.broadcast %cst_24 : f32 to vector<1x128xf32>
    %89 = arith.addf %87, %88 : vector<1x128xf32>
    %90 = math.rsqrt %89 : vector<1x128xf32>
    %91 = arith.mulf %71, %90 : vector<1x128xf32>
    %92 = vector.broadcast %91 : vector<1x128xf32> to vector<8x128xf32>
    %93 = arith.mulf %82, %92 : vector<8x128xf32>
    %94 = vector.broadcast %72 : vector<1x128xf32> to vector<8x128xf32>
    %95 = arith.addf %93, %94 : vector<8x128xf32>
    %cst_25 = arith.constant 0.000000e+00 : f32
    %96 = vector.broadcast %cst_25 : f32 to vector<8x128xf32>
    %97 = arith.maximumf %95, %96 : vector<8x128xf32>
    %c3 = arith.constant 3 : index
    %c0_26 = arith.constant 0 : index
    %c0_27 = arith.constant 0 : index
    %98 = vector.load %arg2[%c3, %c0_26, %c0_27] : memref<6x128x128xf32, #tpu.memory_space<vmem>>, vector<1x128x128xf32>
    %99 = vector.shape_cast %98 : vector<1x128x128xf32> to vector<128x128xf32>
    %cst_28 = arith.constant dense<0.000000e+00> : vector<8x128xf32>
    %100 = tpu.matmul %97, %99, %cst_28 {dimension_numbers = #tpu.dot_dimension_numbers<[1], [0], [0], [1], [0, 0, 1, 1], [], []>} : vector<8x128xf32>, vector<128x128xf32>, vector<8x128xf32> -> vector<8x128xf32>
    %101 = vector.broadcast %73 : vector<1x128xf32> to vector<8x128xf32>
    %102 = arith.addf %100, %101 : vector<8x128xf32>
    %cst_29 = arith.constant dense<0.000000e+00> : vector<128xf32>
    %103 = vector.multi_reduction <add>, %102, %cst_29 [0] : vector<8x128xf32> to vector<128xf32>
    %104 = vector.shape_cast %103 : vector<128xf32> to vector<1x128xf32>
    %105 = vector.broadcast %0 : f32 to vector<1x128xf32>
    %106 = arith.mulf %104, %105 : vector<1x128xf32>
    %107 = vector.broadcast %106 : vector<1x128xf32> to vector<8x128xf32>
    %108 = arith.subf %102, %107 : vector<8x128xf32>
    %109 = arith.mulf %108, %108 : vector<8x128xf32>
    %cst_30 = arith.constant dense<0.000000e+00> : vector<128xf32>
    %110 = vector.multi_reduction <add>, %109, %cst_30 [0] : vector<8x128xf32> to vector<128xf32>
    %111 = vector.shape_cast %110 : vector<128xf32> to vector<1x128xf32>
    %112 = vector.broadcast %0 : f32 to vector<1x128xf32>
    %113 = arith.mulf %111, %112 : vector<1x128xf32>
    %cst_31 = arith.constant 9.99999974E-6 : f32
    %114 = vector.broadcast %cst_31 : f32 to vector<1x128xf32>
    %115 = arith.addf %113, %114 : vector<1x128xf32>
    %116 = math.rsqrt %115 : vector<1x128xf32>
    %117 = arith.mulf %74, %116 : vector<1x128xf32>
    %118 = vector.broadcast %117 : vector<1x128xf32> to vector<8x128xf32>
    %119 = arith.mulf %108, %118 : vector<8x128xf32>
    %120 = vector.broadcast %75 : vector<1x128xf32> to vector<8x128xf32>
    %121 = arith.addf %119, %120 : vector<8x128xf32>
    %cst_32 = arith.constant 0.000000e+00 : f32
    %122 = vector.broadcast %cst_32 : f32 to vector<8x128xf32>
    %123 = arith.maximumf %121, %122 : vector<8x128xf32>
    %c4 = arith.constant 4 : index
    %c0_33 = arith.constant 0 : index
    %c0_34 = arith.constant 0 : index
    %124 = vector.load %arg2[%c4, %c0_33, %c0_34] : memref<6x128x128xf32, #tpu.memory_space<vmem>>, vector<1x128x128xf32>
    %125 = vector.shape_cast %124 : vector<1x128x128xf32> to vector<128x128xf32>
    %cst_35 = arith.constant dense<0.000000e+00> : vector<8x128xf32>
    %126 = tpu.matmul %123, %125, %cst_35 {dimension_numbers = #tpu.dot_dimension_numbers<[1], [0], [0], [1], [0, 0, 1, 1], [], []>} : vector<8x128xf32>, vector<128x128xf32>, vector<8x128xf32> -> vector<8x128xf32>
    %127 = vector.broadcast %76 : vector<1x128xf32> to vector<8x128xf32>
    %128 = arith.addf %126, %127 : vector<8x128xf32>
    %129 = arith.addf %70, %128 : vector<8x128xf32>
    %130 = vector.extract_strided_slice %1 {offsets = [13, 0], sizes = [1, 128], strides = [1, 1]} : vector<16x128xf32> to vector<1x128xf32>
    %131 = vector.extract_strided_slice %1 {offsets = [14, 0], sizes = [1, 128], strides = [1, 1]} : vector<16x128xf32> to vector<1x128xf32>
    %132 = vector.extract_strided_slice %1 {offsets = [15, 0], sizes = [1, 128], strides = [1, 1]} : vector<16x128xf32> to vector<1x128xf32>
    %cst_36 = arith.constant dense<0.000000e+00> : vector<128xf32>
    %133 = vector.multi_reduction <add>, %129, %cst_36 [0] : vector<8x128xf32> to vector<128xf32>
    %134 = vector.shape_cast %133 : vector<128xf32> to vector<1x128xf32>
    %135 = vector.broadcast %0 : f32 to vector<1x128xf32>
    %136 = arith.mulf %134, %135 : vector<1x128xf32>
    %137 = vector.broadcast %136 : vector<1x128xf32> to vector<8x128xf32>
    %138 = arith.subf %129, %137 : vector<8x128xf32>
    %139 = arith.mulf %138, %138 : vector<8x128xf32>
    %cst_37 = arith.constant dense<0.000000e+00> : vector<128xf32>
    %140 = vector.multi_reduction <add>, %139, %cst_37 [0] : vector<8x128xf32> to vector<128xf32>
    %141 = vector.shape_cast %140 : vector<128xf32> to vector<1x128xf32>
    %142 = vector.broadcast %0 : f32 to vector<1x128xf32>
    %143 = arith.mulf %141, %142 : vector<1x128xf32>
    %cst_38 = arith.constant 9.99999974E-6 : f32
    %144 = vector.broadcast %cst_38 : f32 to vector<1x128xf32>
    %145 = arith.addf %143, %144 : vector<1x128xf32>
    %146 = math.rsqrt %145 : vector<1x128xf32>
    %147 = arith.mulf %130, %146 : vector<1x128xf32>
    %148 = vector.broadcast %147 : vector<1x128xf32> to vector<8x128xf32>
    %149 = arith.mulf %138, %148 : vector<8x128xf32>
    %150 = vector.broadcast %131 : vector<1x128xf32> to vector<8x128xf32>
    %151 = arith.addf %149, %150 : vector<8x128xf32>
    %cst_39 = arith.constant 0.000000e+00 : f32
    %152 = vector.broadcast %cst_39 : f32 to vector<8x128xf32>
    %153 = arith.maximumf %151, %152 : vector<8x128xf32>
    %c5 = arith.constant 5 : index
    %c0_40 = arith.constant 0 : index
    %c0_41 = arith.constant 0 : index
    %154 = vector.load %arg2[%c5, %c0_40, %c0_41] : memref<6x128x128xf32, #tpu.memory_space<vmem>>, vector<1x128x128xf32>
    %155 = vector.shape_cast %154 : vector<1x128x128xf32> to vector<128x128xf32>
    %cst_42 = arith.constant dense<0.000000e+00> : vector<8x128xf32>
    %156 = tpu.matmul %153, %155, %cst_42 {dimension_numbers = #tpu.dot_dimension_numbers<[1], [0], [0], [1], [0, 0, 1, 1], [], []>} : vector<8x128xf32>, vector<128x128xf32>, vector<8x128xf32> -> vector<8x128xf32>
    %157 = vector.broadcast %132 : vector<1x128xf32> to vector<8x128xf32>
    %158 = arith.addf %156, %157 : vector<8x128xf32>
    %159 = vector.extract_strided_slice %158 {offsets = [0, 0], sizes = [8, 8], strides = [1, 1]} : vector<8x128xf32> to vector<8x8xf32>
    %c0_43 = arith.constant 0 : index
    %c0_44 = arith.constant 0 : index
    %160 = vector.load %arg4[%c0_43, %c0_44] : memref<8x8xf32, #tpu.memory_space<vmem>>, vector<8x8xf32>
    tpu.vector_store %arg4[%c0_43, %c0_44], %159 {strides = array<i32>} : memref<8x8xf32, #tpu.memory_space<vmem>>, vector<8x8xf32>,
    return
  }
}

</mosaic_0001>

<llo_original>
// kernel: _resmlp_forward_packed.1
$region0: #{_resmlp_forward_packed.1}
  #allocation0 [shape = 'u32[]', space=smem, size = 0x4, offset = 0x4, fixed_abs, tag = 'smem constant byte address 0x4 - core index']
  #allocation1 [shape = 'u32[72,128]{1,0:T(1,128)}', space=vmem, size = 0x9000, scoped, tag = 'internal scratch']
  #allocation2 [shape = 'f32[1]{0:T(128)S(6)}', space=smem, size = 0x200, scoped, tag = 'scoped memory for _resmlp_forward_packed.1']
  %s0 = inlined_call_operand.<no memory space> [shape: f32[1], index: 0, kind: input, shape index: {}]
  %s1 = inlined_call_operand.hbm [shape: f32[8,16], index: 1, kind: input, shape index: {}]
  %s2 = inlined_call_operand.hbm [shape: f32[6,128,128], index: 2, kind: input, shape index: {}]
  %s3 = inlined_call_operand.hbm [shape: f32[16,128], index: 3, kind: input, shape index: {}]
  %s4 = inlined_call_operand.hbm [shape: f32[8,8], index: 4, kind: output, shape index: {}]
  %s5 = sld [smem:[#allocation0]]
  $region38: #{_resmlp_forward_packed.1} parent=0
    _
  %s7 = ssub.s32 1, %s5
  %s8 = scalar_select 0, %s7, %s5
  %9 = sst [smem:[#allocation2]] %s0
  $region1: #{_resmlp_forward_packed.1} parent=0
    #allocation3 [shape = 'u8[4096]{0}', space=vmem, size = 0x1000, scoped, tag = 'input window, operand 1, single buffered']
    #allocation4 [shape = 's32[1]{0}', space=sflag, size = 0x4, scoped, tag = 'scoped memory for _resmlp_forward_packed.1']
    #allocation5 [shape = 's32[1]{0}', space=sflag, size = 0x4, scoped, tag = 'scoped memory for _resmlp_forward_packed.1']
    #allocation6 [shape = 'u8[393216]{0}', space=vmem, size = 0x60000, scoped, tag = 'input window, operand 2, single buffered']
    #allocation7 [shape = 's32[1]{0}', space=sflag, size = 0x4, scoped, tag = 'scoped memory for _resmlp_forward_packed.1']
    #allocation8 [shape = 'u8[8192]{0}', space=vmem, size = 0x2000, scoped, tag = 'input window, operand 3, single buffered']
    #allocation9 [shape = 'u8[4096]{0}', space=vmem, size = 0x1000, scoped, tag = 'output window, operand 0, single buffered']
    %10 = vsyncpa [#allocation4], 0
    %11 = vsyncpa [#allocation7], 0
    %12 = vsyncpa [#allocation5], 0
    // Predicated region
    $region2: #{_resmlp_forward_packed.1} parent=1 // pred_check
      _
    $region3: #{_resmlp_forward_packed.1} parent=1 // pred_check_branch
      %14 = sbr.rel (0) target = $region5
    $region4: #{_resmlp_forward_packed.1} parent=1 // pred_region
      _
    $region5: #{_resmlp_forward_packed.1} parent=1 // pred_fallthru
      _
    // Predicated region
    $region6: #{_resmlp_forward_packed.1} parent=1 // pred_check
      _
    $region7: #{_resmlp_forward_packed.1} parent=1 // pred_check_branch
      %16 = sbr.rel (0) target = $region9
    $region8: #{_resmlp_forward_packed.1} parent=1 // pred_region
      %18 = vsyncadd [#allocation4], 0
      %s20 = sshll.u32 %s1, 4
      %s21 = int_to_ptr.hbm [resolvable:$true] %s20
      %s22 = sshll.u32 [#allocation3], 4
      %s23 = int_to_ptr.vmem [resolvable:$true] %s22
      %25 = dma.hbm_to_vmem [thread:$0]  %s21, 128, %s23, [#allocation4]
    $region9: #{_resmlp_forward_packed.1} parent=1 // pred_fallthru
      _
    // Predicated region
    $region10: #{_resmlp_forward_packed.1} parent=1 // pred_check
      _
    $region11: #{_resmlp_forward_packed.1} parent=1 // pred_check_branch
      %27 = sbr.rel (0) target = $region13
    $region12: #{_resmlp_forward_packed.1} parent=1 // pred_region
      %29 = vsyncadd [#allocation7], 0
      %s30 = sshll.u32 %s2, 4
      %s31 = int_to_ptr.hbm [resolvable:$true] %s30
      %s32 = sshll.u32 [#allocation6], 4
      %s33 = int_to_ptr.vmem [resolvable:$true] %s32
      %38 = dma.hbm_to_vmem [thread:$0]  %s31, 12288, %s33, [#allocation7], 128, 128, 8
    $region13: #{_resmlp_forward_packed.1} parent=1 // pred_fallthru
      _
    // Predicated region
    $region14: #{_resmlp_forward_packed.1} parent=1 // pred_check
      _
    $region15: #{_resmlp_forward_packed.1} parent=1 // pred_check_branch
      %40 = sbr.rel (0) target = $region17
    $region16: #{_resmlp_forward_packed.1} parent=1 // pred_region
      %42 = vsyncadd [#allocation7], 0
      %s43 = sshll.u32 %s3, 4
      %s44 = int_to_ptr.hbm [resolvable:$true] %s43
      %s45 = sshll.u32 [#allocation8], 4
      %s46 = int_to_ptr.vmem [resolvable:$true] %s45
      %51 = dma.hbm_to_vmem [thread:$0]  %s44, 256, %s46, [#allocation7], 128, 128, 8
    $region17: #{_resmlp_forward_packed.1} parent=1 // pred_fallthru
      _
    // Predicated region
    $region18: #{_resmlp_forward_packed.1} parent=1 // pred_check
      _
    $region19: #{_resmlp_forward_packed.1} parent=1 // pred_check_branch
      %53 = sbr.rel (0) target = $region21
    $region20: #{_resmlp_forward_packed.1} parent=1 // pred_region
      %55 = dma.done [#allocation4], 128
    $region21: #{_resmlp_forward_packed.1} parent=1 // pred_fallthru
      _
    // Predicated region
    $region22: #{_resmlp_forward_packed.1} parent=1 // pred_check
      _
    $region23: #{_resmlp_forward_packed.1} parent=1 // pred_check_branch
      %57 = sbr.rel (0) target = $region25
    $region24: #{_resmlp_forward_packed.1} parent=1 // pred_region
      %59 = dma.done [#allocation7], 12288
    $region25: #{_resmlp_forward_packed.1} parent=1 // pred_fallthru
      _
    // Predicated region
    $region26: #{_resmlp_forward_packed.1} parent=1 // pred_check
      _
    $region27: #{_resmlp_forward_packed.1} parent=1 // pred_check_branch
      %61 = sbr.rel (0) target = $region29
    $region28: #{_resmlp_forward_packed.1} parent=1 // pred_region
      %63 = dma.done [#allocation7], 256
    $region29: #{_resmlp_forward_packed.1} parent=1 // pred_fallthru
      _
    %s64 = sld [smem:[#allocation2]]
    %v65 = vld [vmem:[#allocation8] sm:$0xff]
    %v66 = vld [vmem:[#allocation8 + $0x8] sm:$0xff]
    %v67 = vld [vmem:[#allocation6] sm:$0xff]
    %v68 = vld [vmem:[#allocation6 + $0x8] sm:$0xff]
    %v69 = vld [vmem:[#allocation3] sm:$0xff]
    %v70 = vperm.slane %v65, 0
    %vm71 = vcmask 130048
    %v73 = vsel %vm71, %v69, 0
    %75 = vmatpush.msra.mxu0 0.0
    %76 = vmatpush.msra.mxu0 0.0
    %77 = vmatpush.msra.mxu0 0.0
    %78 = vmatpush.msra.mxu0 0.0
    %79 = vmatpush.msra.mxu0 0.0
    %80 = vmatpush.msra.mxu0 0.0
    %81 = vmatpush.msra.mxu0 0.0
    %82 = vmatpush.msra.mxu0 0.0
    %83 = vmatpush.msra.mxu0 0.0
    %84 = vmatpush.msra.mxu0 0.0
    %85 = vmatpush.msra.mxu0 0.0
    %86 = vmatpush.msra.mxu0 0.0
    %87 = vmatpush.msra.mxu0 0.0
    %88 = vmatpush.msra.mxu0 0.0
    %89 = vmatpush.msra.mxu0 %v68
    %90 = vmatpush.msra.mxu0 %v67
    %91 = vmatmul.f32.gmra.mxu0 %v73
    %v92 = vpop.f32.mrf.mxu0
    %v93 = vadd.f32 %v70, %v92
    %94 = vdwg.mxu0
    %v95 = vmax.f32 %v93, 0.0
    %v96 = vrot.slane %v95, 4
    %v97 = vadd.f32 %v95, %v96
    %v98 = vrot.slane %v97, 2
    %v99 = vadd.f32 %v97, %v98
    %v100 = vrot.slane %v99, 1
    %v101 = vadd.f32 %v99, %v100
    %v102 = vstv %s64
    %v103 = vmul.f32 %v101, %v102
    %v104 = vsub.f32 %v95, %v103
    %v105 = vmul.f32 %v104, %v104
    %v106 = vrot.slane %v105, 4
    %v107 = vadd.f32 %v105, %v106
    %v108 = vrot.slane %v107, 2
    %v109 = vadd.f32 %v107, %v108
    %v110 = vrot.slane %v109, 1
    %v111 = vadd.f32 %v109, %v110
    %v112 = vmul.f32 %v111, %v102
    %v113 = vadd.f32 %v112, 1e-05
    %v114 = vrsqrt.pop %v113
    %v115 = vmul.f32 %v114, %v113
    %v116 = vmul.f32 %v115, %v114
    %v117 = vmul.f32 0.5, %v116
    %v118 = vsub.f32 1.5, %v117
    %v119 = vmul.f32 %v114, %v118
    %vm120 = vweird.f32 %v113
    %vm121 = vweird.f32 %v114
    %vm122 = vmor %vm120, %vm121
    %v123 = vsel %vm122, %v114, %v119
    %v124 = vmul.f32 %v65, %v123
    %v125 = vperm.slane %v124, 1
    %v126 = vmul.f32 %v104, %v125
    %v127 = vperm.slane %v65, 2
    %v128 = vadd.f32 %v126, %v127
    %v129 = vmax.f32 %v128, 0.0
    %s130 = scalar_lea.vmem [#allocation6], 128
    %v131 = vld [vmem:[%s130] sm:$0xff]
    %v132 = vld [vmem:[%s130 + $0x8] sm:$0xff]
    %v133 = vld [vmem:[%s130 + $0x10] sm:$0xff]
    %v134 = vld [vmem:[%s130 + $0x18] sm:$0xff]
    %v135 = vld [vmem:[%s130 + $0x20] sm:$0xff]
    %v136 = vld [vmem:[%s130 + $0x28] sm:$0xff]
    %v137 = vld [vmem:[%s130 + $0x30] sm:$0xff]
    %v138 = vld [vmem:[%s130 + $0x38] sm:$0xff]
    %v139 = vld [vmem:[%s130 + $0x40] sm:$0xff]
    %v140 = vld [vmem:[%s130 + $0x48] sm:$0xff]
    %v141 = vld [vmem:[%s130 + $0x50] sm:$0xff]
    %v142 = vld [vmem:[%s130 + $0x58] sm:$0xff]
    %v143 = vld [vmem:[%s130 + $0x60] sm:$0xff]
    %v144 = vld [vmem:[%s130 + $0x68] sm:$0xff]
    %v145 = vld [vmem:[%s130 + $0x70] sm:$0xff]
    %v146 = vld [vmem:[%s130 + $0x78] sm:$0xff]
    %v147 = vperm.slane %v65, 3
    %148 = vmatpush.msra.mxu0 %v146
    %149 = vmatpush.msra.mxu0 %v145
    %150 = vmatpush.msra.mxu0 %v144
    %151 = vmatpush.msra.mxu0 %v143
    %152 = vmatpush.msra.mxu0 %v142
    %153 = vmatpush.msra.mxu0 %v141
    %154 = vmatpush.msra.mxu0 %v140
    %155 = vmatpush.msra.mxu0 %v139
    %156 = vmatpush.msra.mxu0 %v138
    %157 = vmatpush.msra.mxu0 %v137
    %158 = vmatpush.msra.mxu0 %v136
    %159 = vmatpush.msra.mxu0 %v135
    %160 = vmatpush.msra.mxu0 %v134
    %161 = vmatpush.msra.mxu0 %v133
    %162 = vmatpush.msra.mxu0 %v132
    %163 = vmatpush.msra.mxu0 %v131
    %164 = vmatmul.f32.gmra.mxu0 %v129
    %v165 = vpop.f32.mrf.mxu0
    %v166 = vadd.f32 %v147, %v165
    %167 = vdwg.mxu0
    %v168 = vrot.slane %v166, 4
    %v169 = vadd.f32 %v166, %v168
    %v170 = vrot.slane %v169, 2
    %v171 = vadd.f32 %v169, %v170
    %v172 = vrot.slane %v171, 1
    %v173 = vadd.f32 %v171, %v172
    %v174 = vmul.f32 %v173, %v102
    %v175 = vsub.f32 %v166, %v174
    %v176 = vmul.f32 %v175, %v175
    %v177 = vrot.slane %v176, 4
    %v178 = vadd.f32 %v176, %v177
    %v179 = vrot.slane %v178, 2
    %v180 = vadd.f32 %v178, %v179
    %v181 = vrot.slane %v180, 1
    %v182 = vadd.f32 %v180, %v181
    %v183 = vmul.f32 %v182, %v102
    %v184 = vadd.f32 %v183, 1e-05
    %v185 = vrsqrt.pop %v184
    %v186 = vmul.f32 %v185, %v184
    %v187 = vmul.f32 %v186, %v185
    %v188 = vmul.f32 0.5, %v187
    %v189 = vsub.f32 1.5, %v188
    %v190 = vmul.f32 %v185, %v189
    %vm191 = vweird.f32 %v184
    %vm192 = vweird.f32 %v185
    %vm193 = vmor %vm191, %vm192
    %v194 = vsel %vm193, %v185, %v190
    %v195 = vmul.f32 %v65, %v194
    %v196 = vperm.slane %v195, 4
    %v197 = vmul.f32 %v175, %v196
    %v198 = vperm.slane %v65, 5
    %v199 = vadd.f32 %v197, %v198
    %v200 = vmax.f32 %v199, 0.0
    %s201 = scalar_lea.vmem [#allocation6], 256
    %v202 = vld [vmem:[%s201] sm:$0xff]
    %v203 = vld [vmem:[%s201 + $0x8] sm:$0xff]
    %v204 = vld [vmem:[%s201 + $0x10] sm:$0xff]
    %v205 = vld [vmem:[%s201 + $0x18] sm:$0xff]
    %v206 = vld [vmem:[%s201 + $0x20] sm:$0xff]
    %v207 = vld [vmem:[%s201 + $0x28] sm:$0xff]
    %v208 = vld [vmem:[%s201 + $0x30] sm:$0xff]
    %v209 = vld [vmem:[%s201 + $0x38] sm:$0xff]
    %v210 = vld [vmem:[%s201 + $0x40] sm:$0xff]
    %v211 = vld [vmem:[%s201 + $0x48] sm:$0xff]
    %v212 = vld [vmem:[%s201 + $0x50] sm:$0xff]
    %v213 = vld [vmem:[%s201 + $0x58] sm:$0xff]
    %v214 = vld [vmem:[%s201 + $0x60] sm:$0xff]
    %v215 = vld [vmem:[%s201 + $0x68] sm:$0xff]
    %v216 = vld [vmem:[%s201 + $0x70] sm:$0xff]
    %v217 = vld [vmem:[%s201 + $0x78] sm:$0xff]
    %v218 = vperm.slane %v65, 6
    %219 = vmatpush.msra.mxu0 %v217
    %220 = vmatpush.msra.mxu0 %v216
    %221 = vmatpush.msra.mxu0 %v215
    %222 = vmatpush.msra.mxu0 %v214
    %223 = vmatpush.msra.mxu0 %v213
    %224 = vmatpush.msra.mxu0 %v212
    %225 = vmatpush.msra.mxu0 %v211
    %226 = vmatpush.msra.mxu0 %v210
    %227 = vmatpush.msra.mxu0 %v209
    %228 = vmatpush.msra.mxu0 %v208
    %229 = vmatpush.msra.mxu0 %v207
    %230 = vmatpush.msra.mxu0 %v206
    %231 = vmatpush.msra.mxu0 %v205
    %232 = vmatpush.msra.mxu0 %v204
    %233 = vmatpush.msra.mxu0 %v203
    %234 = vmatpush.msra.mxu0 %v202
    %235 = vmatmul.f32.gmra.mxu0 %v200
    %v236 = vpop.f32.mrf.mxu0
    %v237 = vadd.f32 %v218, %v236
    %238 = vdwg.mxu0
    %v239 = vadd.f32 %v95, %v237
    %v240 = vrot.slane %v239, 4
    %v241 = vadd.f32 %v239, %v240
    %v242 = vrot.slane %v241, 2
    %v243 = vadd.f32 %v241, %v242
    %v244 = vrot.slane %v243, 1
    %v245 = vadd.f32 %v243, %v244
    %v246 = vmul.f32 %v245, %v102
    %v247 = vsub.f32 %v239, %v246
    %v248 = vmul.f32 %v247, %v247
    %v249 = vrot.slane %v248, 4
    %v250 = vadd.f32 %v248, %v249
    %v251 = vrot.slane %v250, 2
    %v252 = vadd.f32 %v250, %v251
    %v253 = vrot.slane %v252, 1
    %v254 = vadd.f32 %v252, %v253
    %v255 = vmul.f32 %v254, %v102
    %v256 = vadd.f32 %v255, 1e-05
    %v257 = vrsqrt.pop %v256
    %v258 = vmul.f32 %v257, %v256
    %v259 = vmul.f32 %v258, %v257
    %v260 = vmul.f32 0.5, %v259
    %v261 = vsub.f32 1.5, %v260
    %v262 = vmul.f32 %v257, %v261
    %vm263 = vweird.f32 %v256
    %vm264 = vweird.f32 %v257
    %vm265 = vmor %vm263, %vm264
    %v266 = vsel %vm265, %v257, %v262
    %v267 = vmul.f32 %v65, %v266
    %v268 = vperm.slane %v267, 7
    %v269 = vmul.f32 %v247, %v268
    %v270 = vperm.slane %v66, 0
    %v271 = vadd.f32 %v269, %v270
    %v272 = vmax.f32 %v271, 0.0
    %s273 = scalar_lea.vmem [#allocation6], 384
    %v274 = vld [vmem:[%s273] sm:$0xff]
    %v275 = vld [vmem:[%s273 + $0x8] sm:$0xff]
    %v276 = vld [vmem:[%s273 + $0x10] sm:$0xff]
    %v277 = vld [vmem:[%s273 + $0x18] sm:$0xff]
    %v278 = vld [vmem:[%s273 + $0x20] sm:$0xff]
    %v279 = vld [vmem:[%s273 + $0x28] sm:$0xff]
    %v280 = vld [vmem:[%s273 + $0x30] sm:$0xff]
    %v281 = vld [vmem:[%s273 + $0x38] sm:$0xff]
    %v282 = vld [vmem:[%s273 + $0x40] sm:$0xff]
    %v283 = vld [vmem:[%s273 + $0x48] sm:$0xff]
    %v284 = vld [vmem:[%s273 + $0x50] sm:$0xff]
    %v285 = vld [vmem:[%s273 + $0x58] sm:$0xff]
    %v286 = vld [vmem:[%s273 + $0x60] sm:$0xff]
    %v287 = vld [vmem:[%s273 + $0x68] sm:$0xff]
    %v288 = vld [vmem:[%s273 + $0x70] sm:$0xff]
    %v289 = vld [vmem:[%s273 + $0x78] sm:$0xff]
    %v290 = vperm.slane %v66, 1
    %291 = vmatpush.msra.mxu0 %v289
    %292 = vmatpush.msra.mxu0 %v288
    %293 = vmatpush.msra.mxu0 %v287
    %294 = vmatpush.msra.mxu0 %v286
    %295 = vmatpush.msra.mxu0 %v285
    %296 = vmatpush.msra.mxu0 %v284
    %297 = vmatpush.msra.mxu0 %v283
    %298 = vmatpush.msra.mxu0 %v282
    %299 = vmatpush.msra.mxu0 %v281
    %300 = vmatpush.msra.mxu0 %v280
    %301 = vmatpush.msra.mxu0 %v279
    %302 = vmatpush.msra.mxu0 %v278
    %303 = vmatpush.msra.mxu0 %v277
    %304 = vmatpush.msra.mxu0 %v276
    %305 = vmatpush.msra.mxu0 %v275
    %306 = vmatpush.msra.mxu0 %v274
    %307 = vmatmul.f32.gmra.mxu0 %v272
    %v308 = vpop.f32.mrf.mxu0
    %v309 = vadd.f32 %v290, %v308
    %310 = vdwg.mxu0
    %v311 = vrot.slane %v309, 4
    %v312 = vadd.f32 %v309, %v311
    %v313 = vrot.slane %v312, 2
    %v314 = vadd.f32 %v312, %v313
    %v315 = vrot.slane %v314, 1
    %v316 = vadd.f32 %v314, %v315
    %v317 = vmul.f32 %v316, %v102
    %v318 = vsub.f32 %v309, %v317
    %v319 = vmul.f32 %v318, %v318
    %v320 = vrot.slane %v319, 4
    %v321 = vadd.f32 %v319, %v320
    %v322 = vrot.slane %v321, 2
    %v323 = vadd.f32 %v321, %v322
    %v324 = vrot.slane %v323, 1
    %v325 = vadd.f32 %v323, %v324
    %v326 = vmul.f32 %v325, %v102
    %v327 = vadd.f32 %v326, 1e-05
    %v328 = vrsqrt.pop %v327
    %v329 = vmul.f32 %v328, %v327
    %v330 = vmul.f32 %v329, %v328
    %v331 = vmul.f32 0.5, %v330
    %v332 = vsub.f32 1.5, %v331
    %v333 = vmul.f32 %v328, %v332
    %vm334 = vweird.f32 %v327
    %vm335 = vweird.f32 %v328
    %vm336 = vmor %vm334, %vm335
    %v337 = vsel %vm336, %v328, %v333
    %v338 = vmul.f32 %v66, %v337
    %v339 = vperm.slane %v338, 2
    %v340 = vmul.f32 %v318, %v339
    %v341 = vperm.slane %v66, 3
    %v342 = vadd.f32 %v340, %v341
    %v343 = vmax.f32 %v342, 0.0
    %s344 = scalar_lea.vmem [#allocation6], 512
    %v345 = vld [vmem:[%s344] sm:$0xff]
    %v346 = vld [vmem:[%s344 + $0x8] sm:$0xff]
    %v347 = vld [vmem:[%s344 + $0x10] sm:$0xff]
    %v348 = vld [vmem:[%s344 + $0x18] sm:$0xff]
    %v349 = vld [vmem:[%s344 + $0x20] sm:$0xff]
    %v350 = vld [vmem:[%s344 + $0x28] sm:$0xff]
    %v351 = vld [vmem:[%s344 + $0x30] sm:$0xff]
    %v352 = vld [vmem:[%s344 + $0x38] sm:$0xff]
    %v353 = vld [vmem:[%s344 + $0x40] sm:$0xff]
    %v354 = vld [vmem:[%s344 + $0x48] sm:$0xff]
    %v355 = vld [vmem:[%s344 + $0x50] sm:$0xff]
    %v356 = vld [vmem:[%s344 + $0x58] sm:$0xff]
    %v357 = vld [vmem:[%s344 + $0x60] sm:$0xff]
    %v358 = vld [vmem:[%s344 + $0x68] sm:$0xff]
    %v359 = vld [vmem:[%s344 + $0x70] sm:$0xff]
    %v360 = vld [vmem:[%s344 + $0x78] sm:$0xff]
    %v361 = vperm.slane %v66, 4
    %362 = vmatpush.msra.mxu0 %v360
    %363 = vmatpush.msra.mxu0 %v359
    %364 = vmatpush.msra.mxu0 %v358
    %365 = vmatpush.msra.mxu0 %v357
    %366 = vmatpush.msra.mxu0 %v356
    %367 = vmatpush.msra.mxu0 %v355
    %368 = vmatpush.msra.mxu0 %v354
    %369 = vmatpush.msra.mxu0 %v353
    %370 = vmatpush.msra.mxu0 %v352
    %371 = vmatpush.msra.mxu0 %v351
    %372 = vmatpush.msra.mxu0 %v350
    %373 = vmatpush.msra.mxu0 %v349
    %374 = vmatpush.msra.mxu0 %v348
    %375 = vmatpush.msra.mxu0 %v347
    %376 = vmatpush.msra.mxu0 %v346
    %377 = vmatpush.msra.mxu0 %v345
    %378 = vmatmul.f32.gmra.mxu0 %v343
    %v379 = vpop.f32.mrf.mxu0
    %v380 = vadd.f32 %v361, %v379
    %381 = vdwg.mxu0
    %v382 = vadd.f32 %v239, %v380
    %v383 = vrot.slane %v382, 4
    %v384 = vadd.f32 %v382, %v383
    %v385 = vrot.slane %v384, 2
    %v386 = vadd.f32 %v384, %v385
    %v387 = vrot.slane %v386, 1
    %v388 = vadd.f32 %v386, %v387
    %v389 = vmul.f32 %v388, %v102
    %v390 = vsub.f32 %v382, %v389
    %v391 = vmul.f32 %v390, %v390
    %v392 = vrot.slane %v391, 4
    %v393 = vadd.f32 %v391, %v392
    %v394 = vrot.slane %v393, 2
    %v395 = vadd.f32 %v393, %v394
    %v396 = vrot.slane %v395, 1
    %v397 = vadd.f32 %v395, %v396
    %v398 = vmul.f32 %v397, %v102
    %v399 = vadd.f32 %v398, 1e-05
    %v400 = vrsqrt.pop %v399
    %v401 = vmul.f32 %v400, %v399
    %v402 = vmul.f32 %v401, %v400
    %v403 = vmul.f32 0.5, %v402
    %v404 = vsub.f32 1.5, %v403
    %v405 = vmul.f32 %v400, %v404
    %vm406 = vweird.f32 %v399
    %vm407 = vweird.f32 %v400
    %vm408 = vmor %vm406, %vm407
    %v409 = vsel %vm408, %v400, %v405
    %v410 = vmul.f32 %v66, %v409
    %v411 = vperm.slane %v410, 5
    %v412 = vmul.f32 %v390, %v411
    %v413 = vperm.slane %v66, 6
    %v414 = vadd.f32 %v412, %v413
    %v415 = vmax.f32 %v414, 0.0
    %s416 = scalar_lea.vmem [#allocation6], 640
    %v417 = vld [vmem:[%s416] sm:$0xff]
    %v418 = vld [vmem:[%s416 + $0x8] sm:$0xff]
    %v419 = vld [vmem:[%s416 + $0x10] sm:$0xff]
    %v420 = vld [vmem:[%s416 + $0x18] sm:$0xff]
    %v421 = vld [vmem:[%s416 + $0x20] sm:$0xff]
    %v422 = vld [vmem:[%s416 + $0x28] sm:$0xff]
    %v423 = vld [vmem:[%s416 + $0x30] sm:$0xff]
    %v424 = vld [vmem:[%s416 + $0x38] sm:$0xff]
    %v425 = vld [vmem:[%s416 + $0x40] sm:$0xff]
    %v426 = vld [vmem:[%s416 + $0x48] sm:$0xff]
    %v427 = vld [vmem:[%s416 + $0x50] sm:$0xff]
    %v428 = vld [vmem:[%s416 + $0x58] sm:$0xff]
    %v429 = vld [vmem:[%s416 + $0x60] sm:$0xff]
    %v430 = vld [vmem:[%s416 + $0x68] sm:$0xff]
    %v431 = vld [vmem:[%s416 + $0x70] sm:$0xff]
    %v432 = vld [vmem:[%s416 + $0x78] sm:$0xff]
    %v433 = vperm.slane %v66, 7
    %434 = vmatpush.msra.mxu0 %v432
    %435 = vmatpush.msra.mxu0 %v431
    %436 = vmatpush.msra.mxu0 %v430
    %437 = vmatpush.msra.mxu0 %v429
    %438 = vmatpush.msra.mxu0 %v428
    %439 = vmatpush.msra.mxu0 %v427
    %440 = vmatpush.msra.mxu0 %v426
    %441 = vmatpush.msra.mxu0 %v425
    %442 = vmatpush.msra.mxu0 %v424
    %443 = vmatpush.msra.mxu0 %v423
    %444 = vmatpush.msra.mxu0 %v422
    %445 = vmatpush.msra.mxu0 %v421
    %446 = vmatpush.msra.mxu0 %v420
    %447 = vmatpush.msra.mxu0 %v419
    %448 = vmatpush.msra.mxu0 %v418
    %449 = vmatpush.msra.mxu0 %v417
    %450 = vmatmul.f32.gmra.mxu0 %v415
    %v451 = vpop.f32.mrf.mxu0
    %v452 = vadd.f32 %v433, %v451
    %453 = vdwg.mxu0
    %vm454 = vcmask 64512
    %455 = vst.msk [vmem:[#allocation9] sm:$0xff] %vm454, %v452
    // Predicated region
    $region30: #{_resmlp_forward_packed.1} parent=1 // pred_check
      _
    $region31: #{_resmlp_forward_packed.1} parent=1 // pred_check_branch
      %457 = sbr.rel (0) target = $region33
    $region32: #{_resmlp_forward_packed.1} parent=1 // pred_region
      %459 = vsyncadd [#allocation5], 0
      %s461 = sshll.u32 [#allocation9], 4
      %s462 = int_to_ptr.vmem [resolvable:$true] %s461
      %s463 = sshll.u32 %s4, 4
      %s464 = int_to_ptr.hbm [resolvable:$true] %s463
      %466 = dma.vmem_to_hbm [thread:$0]  %s462, 128, %s464, [#allocation5]
    $region33: #{_resmlp_forward_packed.1} parent=1 // pred_fallthru
      _
    // Predicated region
    $region34: #{_resmlp_forward_packed.1} parent=1 // pred_check
      _
    $region35: #{_resmlp_forward_packed.1} parent=1 // pred_check_branch
      %468 = sbr.rel (0) target = $region37
    $region36: #{_resmlp_forward_packed.1} parent=1 // pred_region
      %470 = dma.done [#allocation5], 128
    $region37: #{_resmlp_forward_packed.1} parent=1 // pred_fallthru
      _
    %471 = vsyncpa [#allocation4], 1
    %472 = vsyncpa [#allocation7], 1
    %473 = vsyncpa [#allocation5], 1

</llo_original>
